<compile_context>
chip_gen: v7x
topology: tpu7x:2x2x1
jax: 0.10.0
libtpu: 0.0.40
codegen_flags: <defaults>
</compile_context>

<pallas_src>
import functools

import jax
import jax.numpy as jnp
from jax import lax
from jax.experimental import pallas as pl
from jax.experimental.pallas import tpu as pltpu

EPS = 1e-12
POWER_ITERATIONS = 1  # module default


def _l2normalize(v, eps=EPS):
    # v / (||v||_2 + eps), identical to the PyTorch l2normalize helper
    return v / (jnp.sqrt(jnp.sum(v * v)) + eps)


def _vmem_capacity_bytes():
    # Generation-aware VMEM capacity (128 MiB on v5e/v6e, 64 MiB per TC on v7x).
    try:
        return int(pltpu.get_tpu_info().vmem_capacity_bytes)
    except Exception:
        return 128 * 1024 * 1024


# ---------------------------------------------------------------------------
# Kernel 1: power iteration + sigma.  Runs ONCE (not per batch tile).
# ---------------------------------------------------------------------------
def _power_iter_kernel(w_ref, u_ref, v_ref, snreg_ref, u_out_ref, v_out_ref):
    w = w_ref[...]            # (H, K) f32, fully VMEM-resident
    u = u_ref[...]            # (1, H)
    v = v_ref[...]            # (1, K)

    wv = None
    for _ in range(POWER_ITERATIONS):
        # v = l2normalize(W^T u) == l2normalize(u @ W)               -> (1, K)
        v_un = jnp.dot(u, w, preferred_element_type=jnp.float32)
        v = v_un / (jnp.sqrt(jnp.sum(v_un * v_un)) + EPS)
        # W v: contract v with W's last dim (no transposed W temp)   -> (1, H)
        wv = lax.dot_general(v, w, dimension_numbers=(((1,), (1,)), ((), ())),
                             preferred_element_type=jnp.float32)
        u = wv / (jnp.sqrt(jnp.sum(wv * wv)) + EPS)

    # sigma = u . (W v): v is unchanged after the last W v, so reusing the
    # hoisted unnormalized wv is exact (no third mat-vec).
    sigma = jnp.sum(u * wv)
    snreg_ref[0, 0] = 0.5 * sigma * sigma          # scalar -> SMEM
    u_out_ref[...] = u                             # PyTorch updates u.data / v.data
    v_out_ref[...] = v


def _power_iteration(w, u, v):
    H, K = w.shape
    capacity = _vmem_capacity_bytes()
    needed = 2 * H * K * 4 + 8 * (H + K) * 4 + (1 << 20)
    vmem_limit = int(min(max(needed, 16 << 20), int(0.9 * capacity)))
    # TODO(synk): tile W over K for layers where 2*H*K*4 exceeds VMEM (not
    # needed for the shapes exercised here).
    return pl.pallas_call(
        _power_iter_kernel,
        grid=(1,),
        in_specs=[pl.BlockSpec((H, K), lambda i: (0, 0)),
                  pl.BlockSpec((1, H), lambda i: (0, 0)),
                  pl.BlockSpec((1, K), lambda i: (0, 0))],
        out_specs=(pl.BlockSpec(memory_space=pltpu.MemorySpace.SMEM),
                   pl.BlockSpec((1, H), lambda i: (0, 0)),
                   pl.BlockSpec((1, K), lambda i: (0, 0))),
        out_shape=(jax.ShapeDtypeStruct((1, 1), jnp.float32),   # snreg
                   jax.ShapeDtypeStruct((1, H), jnp.float32),   # updated u
                   jax.ShapeDtypeStruct((1, K), jnp.float32)),  # updated v
        compiler_params=pltpu.CompilerParams(vmem_limit_bytes=vmem_limit),
        cost_estimate=pl.CostEstimate(
            flops=POWER_ITERATIONS * 4 * H * K + 2 * H,
            transcendentals=0,
            bytes_accessed=4 * (H * K + 3 * H + 2 * K + 1)),
    )(w, u, v)


# ---------------------------------------------------------------------------
# Kernel 2: pure batch-tiled Linear  y = x @ W^T + b.  The weight arrives
# pre-transposed/pre-cast as (K, H), so the dot is the canonical weight-
# stationary (tb,K)x(K,H) MXU contraction with f32 accumulation.
# ---------------------------------------------------------------------------
def _linear_kernel(x_ref, wt_ref, b_ref, y_ref, *, matmul_dtype):
    x = x_ref[...].astype(matmul_dtype)
    y = jnp.dot(x, wt_ref[...], preferred_element_type=jnp.float32)
    y_ref[...] = (y + b_ref[...]).astype(y_ref.dtype)


def _round_down(n, m):
    return max((n // m) * m, m)


def _linear_forward(x, w_t, b, *, block_b, matmul_dtype, out_dtype):
    B, K = x.shape
    K2, H = w_t.shape
    assert K == K2 and b.shape == (1, H)

    x_bytes = x.dtype.itemsize
    mm_bytes = jnp.dtype(matmul_dtype).itemsize
    y_bytes = jnp.dtype(out_dtype).itemsize

    capacity = _vmem_capacity_bytes()
    budget = int(0.85 * capacity) - (4 << 20)      # leave headroom (v7x: 64 MiB)

    resident = K * H * mm_bytes + 8 * H * 4        # W^T + bias (+ padding slack)

    def needed(tb):
        # double-buffered x / y tiles + in-kernel cast temp of the x tile
        return (resident + 2 * tb * K * x_bytes + 2 * tb * H * y_bytes
                + tb * (K + H) * mm_bytes + (1 << 20))

    align = 16 if mm_bytes < 4 else 8              # bf16 sublane packing
    tb = min(B, block_b)
    if tb < B:
        if tb >= 256:
            tb = _round_down(tb, 256)              # 2x256^2 MXU (v6e/v7x)
        elif tb >= 128:
            tb = _round_down(tb, 128)
        else:
            tb = _round_down(tb, align)
        while tb > align and needed(tb) > budget:
            tb = _round_down(tb // 2, align)
    # TODO(synk): if W^T alone overflows the VMEM budget (very large K*H), add
    # an H grid axis with W blocked (K, tile_h) instead of full residency.

    grid = (pl.cdiv(B, tb),)
    vmem_limit = int(min(max(needed(tb) + (8 << 20), 32 << 20),
                         int(0.9 * capacity)))

    kernel = functools.partial(_linear_kernel, matmul_dtype=matmul_dtype)
    resident_map = lambda i: (0, 0)   # same block every step -> one HBM read

    return pl.pallas_call(
        kernel,
        grid=grid,
        in_specs=[pl.BlockSpec((tb, K), lambda i: (i, 0)),    # x: tiled over batch
                  pl.BlockSpec((K, H), resident_map),         # W^T (VMEM-resident)
                  pl.BlockSpec((1, H), resident_map)],        # bias (resident)
        out_specs=pl.BlockSpec((tb, H), lambda i: (i, 0)),    # y: tiled over batch
        out_shape=jax.ShapeDtypeStruct((B, H), out_dtype),
        compiler_params=pltpu.CompilerParams(
            dimension_semantics=("parallel",),    # batch tiles shard across TCs
            vmem_limit_bytes=vmem_limit),
        cost_estimate=pl.CostEstimate(
            flops=2 * B * K * H,
            transcendentals=0,
            bytes_accessed=(B * K * x_bytes + K * H * mm_bytes
                            + H * 4 + B * H * y_bytes)),
    )(x, w_t, b)


# ---------------------------------------------------------------------------
# Full SpectralNormReg.forward
# ---------------------------------------------------------------------------
def spectral_norm_reg_forward(x, w, b, u, v, *, block_b=512,
                              matmul_dtype=jnp.float32, out_dtype=None):
    B, K = x.shape
    H, K2 = w.shape
    assert K == K2 and b.shape == (1, H) and u.shape == (1, H) and v.shape == (1, K)
    if out_dtype is None:
        out_dtype = x.dtype

    # 1) power iteration + snreg: single tiny pallas_call (hoisted out of the
    #    batch loop; always f32 regardless of matmul_dtype).
    snreg, u_new, v_new = _power_iteration(w, u, v)

    # 2) one-time weight prep outside the inner loop: transpose to (K, H) so
    #    the forward dot is the canonical lhs-last/rhs-first contraction, and
    #    pre-cast to the matmul dtype (weight unchanged: w_bar / 1).
    w_t = jnp.transpose(w).astype(matmul_dtype)

    # 3) nn.Linear forward: y = x @ W^T + b, batch-tiled & pipelined.
    y = _linear_forward(x, w_t, b, block_b=block_b,
                        matmul_dtype=matmul_dtype, out_dtype=out_dtype)
    return y, snreg, u_new, v_new


# ---------------------------------------------------------------------------
# Pure-JAX reference mirroring the PyTorch math
# ---------------------------------------------------------------------------
def _dot_hi(a, b):
    return jnp.dot(a, b, precision=jax.lax.Precision.HIGHEST)


def _reference(x, w, b, u, v):
    for _ in range(POWER_ITERATIONS):
        v = _l2normalize(_dot_hi(u, w))
        u = _l2normalize(_dot_hi(v, w.T))
    sigma = jnp.sum(u * _dot_hi(v, w.T))
    snreg = 0.5 * sigma * sigma
    y = _dot_hi(x, w.T) + b
    return y, snreg, u, v


if __name__ == "__main__":
    # ---- Case 1: wrapped nn.Linear(32 -> 16), batch=2, strict f32 check ----
    batch, in_features, out_features = 2, 32, 16
    key = jax.random.PRNGKey(0)
    k_x, k_w, k_b, k_u, k_v = jax.random.split(key, 5)

    x = jax.random.normal(k_x, (batch, in_features), dtype=jnp.float32)
    w = jax.random.normal(k_w, (out_features, in_features), dtype=jnp.float32) * 0.1
    b = jax.random.normal(k_b, (1, out_features), dtype=jnp.float32) * 0.1
    u0 = _l2normalize(jax.random.normal(k_u, (1, out_features), dtype=jnp.float32))
    v0 = _l2normalize(jax.random.normal(k_v, (1, in_features), dtype=jnp.float32))

    y, snreg, u_new, v_new = spectral_norm_reg_forward(x, w, b, u0, v0)
    jax.block_until_ready((y, snreg, u_new, v_new))

    y_r, sn_r, u_r, v_r = _reference(x, w, b, u0, v0)
    assert jnp.allclose(y, y_r, atol=1e-5, rtol=1e-5)
    assert jnp.allclose(snreg[0, 0], sn_r, atol=1e-5, rtol=1e-5)
    assert jnp.allclose(u_new, u_r, atol=1e-5, rtol=1e-5)
    assert jnp.allclose(v_new, v_r, atol=1e-5, rtol=1e-5)

    # ---- Case 2: multi-tile batch grid + bf16 forward matmul (f32 accum) ----
    B2, K2, H2 = 256, 128, 128
    k_x, k_w, k_b, k_u, k_v = jax.random.split(jax.random.PRNGKey(1), 5)
    x2 = jax.random.normal(k_x, (B2, K2), dtype=jnp.float32)
    w2 = jax.random.normal(k_w, (H2, K2), dtype=jnp.float32) * 0.1
    b2 = jax.random.normal(k_b, (1, H2), dtype=jnp.float32) * 0.1
    u02 = _l2normalize(jax.random.normal(k_u, (1, H2), dtype=jnp.float32))
    v02 = _l2normalize(jax.random.normal(k_v, (1, K2), dtype=jnp.float32))

    y2, sn2, u2, v2 = spectral_norm_reg_forward(
        x2, w2, b2, u02, v02, block_b=128, matmul_dtype=jnp.bfloat16)
    jax.block_until_ready((y2, sn2, u2, v2))

    y2_r, sn2_r, u2_r, v2_r = _reference(x2, w2, b2, u02, v02)
    # power iteration / sigma stay f32 regardless of matmul_dtype
    assert jnp.allclose(u2, u2_r, atol=1e-4, rtol=1e-4)
    assert jnp.allclose(v2, v2_r, atol=1e-4, rtol=1e-4)
    assert jnp.allclose(sn2[0, 0], sn2_r, atol=1e-4, rtol=1e-4)
    # forward matmul uses a pre-cast bf16 weight -> loose tolerance vs f32 ref
    assert jnp.allclose(y2, y2_r, atol=5e-2, rtol=5e-2)

    print("KERNEL_OK")
</pallas_src>

<mosaic_0001>
module attributes {stable_mosaic.version = 11 : i64} {
  func.func @_power_iter_kernel(%arg0: i32, %arg1: memref<16x32xf32, #tpu.memory_space<vmem>>, %arg2: memref<1x16xf32, #tpu.memory_space<vmem>>, %arg3: memref<1x32xf32, #tpu.memory_space<vmem>>, %arg4: memref<1x1xf32, #tpu.memory_space<smem>>, %arg5: memref<1x16xf32, #tpu.memory_space<vmem>>, %arg6: memref<1x32xf32, #tpu.memory_space<vmem>>) attributes {dimension_semantics = [#tpu.dimension_semantics<arbitrary>], iteration_bounds = array<i64: 1>, scalar_prefetch = 0 : i64, scratch_operands = 0 : i64, tpu.core_type = #tpu.core_type<tc>, window_params = [{pipeline_mode = #tpu.pipeline_mode<synchronous>, transform_indices = @transform_0, window_bounds = array<i64: 16, 32>}, {pipeline_mode = #tpu.pipeline_mode<synchronous>, transform_indices = @transform_1, window_bounds = array<i64: 1, 16>}, {pipeline_mode = #tpu.pipeline_mode<synchronous>, transform_indices = @transform_2, window_bounds = array<i64: 1, 32>}, {transform_indices = @transform_3, window_bounds = array<i64: 1, 1>}, {pipeline_mode = #tpu.pipeline_mode<synchronous>, transform_indices = @transform_4, window_bounds = array<i64: 1, 16>}, {pipeline_mode = #tpu.pipeline_mode<synchronous>, transform_indices = @transform_5, window_bounds = array<i64: 1, 32>}]} {
    %c0 = arith.constant 0 : index
    %c0_0 = arith.constant 0 : index
    %0 = vector.load %arg1[%c0, %c0_0] : memref<16x32xf32, #tpu.memory_space<vmem>>, vector<16x32xf32>
    %c0_1 = arith.constant 0 : index
    %c0_2 = arith.constant 0 : index
    %1 = vector.load %arg2[%c0_1, %c0_2] : memref<1x16xf32, #tpu.memory_space<vmem>>, vector<1x16xf32>
    %cst = arith.constant dense<0.000000e+00> : vector<1x32xf32>
    %2 = tpu.matmul %1, %0, %cst {dimension_numbers = #tpu.dot_dimension_numbers<[1], [0], [0], [1], [0, 0, 1, 1], [], []>} : vector<1x16xf32>, vector<16x32xf32>, vector<1x32xf32> -> vector<1x32xf32>
    %3 = arith.mulf %2, %2 : vector<1x32xf32>
    %4 = vector.shape_cast %3 : vector<1x32xf32> to vector<1x1x32xf32>
    %cst_3 = arith.constant dense<0.000000e+00> : vector<1xf32>
    %5 = vector.multi_reduction <add>, %4, %cst_3 [1, 2] : vector<1x1x32xf32> to vector<1xf32>
    %6 = vector.shape_cast %5 : vector<1xf32> to vector<1x1x1xf32>
    %7 = vector.extract %6[0, 0, 0] : f32 from vector<1x1x1xf32>
    %8 = math.sqrt %7 : f32
    %cst_4 = arith.constant 9.99999996E-13 : f32
    %9 = arith.addf %8, %cst_4 : f32
    %10 = vector.broadcast %9 : f32 to vector<1x32xf32>
    %11 = arith.divf %2, %10 : vector<1x32xf32>
    %cst_5 = arith.constant dense<0.000000e+00> : vector<1x16xf32>
    %12 = tpu.matmul %11, %0, %cst_5 {dimension_numbers = #tpu.dot_dimension_numbers<[1], [1], [0], [0], [0, 0, 1, 0], [], []>} : vector<1x32xf32>, vector<16x32xf32>, vector<1x16xf32> -> vector<1x16xf32>
    %13 = arith.mulf %12, %12 : vector<1x16xf32>
    %14 = vector.shape_cast %13 : vector<1x16xf32> to vector<1x1x16xf32>
    %cst_6 = arith.constant dense<0.000000e+00> : vector<1xf32>
    %15 = vector.multi_reduction <add>, %14, %cst_6 [1, 2] : vector<1x1x16xf32> to vector<1xf32>
    %16 = vector.shape_cast %15 : vector<1xf32> to vector<1x1x1xf32>
    %17 = vector.extract %16[0, 0, 0] : f32 from vector<1x1x1xf32>
    %18 = math.sqrt %17 : f32
    %cst_7 = arith.constant 9.99999996E-13 : f32
    %19 = arith.addf %18, %cst_7 : f32
    %20 = vector.broadcast %19 : f32 to vector<1x16xf32>
    %21 = arith.divf %12, %20 : vector<1x16xf32>
    %22 = arith.mulf %21, %12 : vector<1x16xf32>
    %23 = vector.shape_cast %22 : vector<1x16xf32> to vector<1x1x16xf32>
    %cst_8 = arith.constant dense<0.000000e+00> : vector<1xf32>
    %24 = vector.multi_reduction <add>, %23, %cst_8 [1, 2] : vector<1x1x16xf32> to vector<1xf32>
    %25 = vector.shape_cast %24 : vector<1xf32> to vector<1x1x1xf32>
    %26 = vector.extract %25[0, 0, 0] : f32 from vector<1x1x1xf32>
    %cst_9 = arith.constant 5.000000e-01 : f32
    %27 = arith.mulf %cst_9, %26 : f32
    %28 = arith.mulf %27, %26 : f32
    %c0_10 = arith.constant 0 : index
    %c0_11 = arith.constant 0 : index
    %29 = memref.load %arg4[%c0_10, %c0_11] : memref<1x1xf32, #tpu.memory_space<smem>>
    memref.store %28, %arg4[%c0_10, %c0_11] : memref<1x1xf32, #tpu.memory_space<smem>>
    %c0_12 = arith.constant 0 : index
    %c0_13 = arith.constant 0 : index
    %30 = vector.load %arg5[%c0_12, %c0_13] : memref<1x16xf32, #tpu.memory_space<vmem>>, vector<1x16xf32>
    tpu.vector_store %arg5[%c0_12, %c0_13], %21 {strides = array<i32>} : memref<1x16xf32, #tpu.memory_space<vmem>>, vector<1x16xf32>,
    %c0_14 = arith.constant 0 : index
    %c0_15 = arith.constant 0 : index
    %31 = vector.load %arg6[%c0_14, %c0_15] : memref<1x32xf32, #tpu.memory_space<vmem>>, vector<1x32xf32>
    tpu.vector_store %arg6[%c0_14, %c0_15], %11 {strides = array<i32>} : memref<1x32xf32, #tpu.memory_space<vmem>>, vector<1x32xf32>,
    return
  }
  func.func @transform_0(%arg0: i32) -> (i32, i32) {
    %c0_i32 = arith.constant 0 : i32
    %c0_i32_0 = arith.constant 0 : i32
    %c0_i32_1 = arith.constant 0 : i32
    return %c0_i32, %c0_i32_0 : i32, i32
  }
  func.func @transform_1(%arg0: i32) -> (i32, i32) {
    %c0_i32 = arith.constant 0 : i32
    %c0_i32_0 = arith.constant 0 : i32
    %c0_i32_1 = arith.constant 0 : i32
    return %c0_i32, %c0_i32_0 : i32, i32
  }
  func.func @transform_2(%arg0: i32) -> (i32, i32) {
    %c0_i32 = arith.constant 0 : i32
    %c0_i32_0 = arith.constant 0 : i32
    %c0_i32_1 = arith.constant 0 : i32
    return %c0_i32, %c0_i32_0 : i32, i32
  }
  func.func @transform_3(%arg0: i32) -> (i32, i32) {
    %c0_i32 = arith.constant 0 : i32
    %c0_i32_0 = arith.constant 0 : i32
    %c0_i32_1 = arith.constant 0 : i32
    return %c0_i32, %c0_i32_0 : i32, i32
  }
  func.func @transform_4(%arg0: i32) -> (i32, i32) {
    %c0_i32 = arith.constant 0 : i32
    %c0_i32_0 = arith.constant 0 : i32
    %c0_i32_1 = arith.constant 0 : i32
    return %c0_i32, %c0_i32_0 : i32, i32
  }
  func.func @transform_5(%arg0: i32) -> (i32, i32) {
    %c0_i32 = arith.constant 0 : i32
    %c0_i32_0 = arith.constant 0 : i32
    %c0_i32_1 = arith.constant 0 : i32
    return %c0_i32, %c0_i32_0 : i32, i32
  }
}

</mosaic_0001>

<llo_original>
// kernel: tpu_custom_call.1
$region0: #{tpu_custom_call.1}
  #allocation0 [shape = 'u32[]', space=smem, size = 0x4, offset = 0x4, fixed_abs, tag = 'smem constant byte address 0x4 - core index']
  #allocation1 [shape = 'u32[144,128]{1,0:T(1,128)}', space=vmem, size = 0x12000, scoped, tag = 'internal scratch']
  %s0 = inlined_call_operand.hbm [shape: f32[16,32], index: 0, kind: input, shape index: {}]
  %s1 = inlined_call_operand.vmem [shape: f32[1,16], index: 1, kind: input, shape index: {}]
  %s2 = inlined_call_operand.vmem [shape: f32[1,32], index: 2, kind: input, shape index: {}]
  %s3 = inlined_call_operand.hbm [shape: f32[1,1], index: 3, kind: output, shape index: {0}]
  %s4 = inlined_call_operand.hbm [shape: f32[1,16], index: 4, kind: output, shape index: {1}]
  %s5 = inlined_call_operand.hbm [shape: f32[1,32], index: 5, kind: output, shape index: {2}]
  %6 = xla_tuple %s3, %s4, %s5
  %s7 = sld [smem:[#allocation0]]
  $region42: #{tpu_custom_call.1} parent=0
    _
  %s9 = ssub.s32 1, %s7
  %s10 = scalar_select 0, %s9, %s7
  $region1: #{tpu_custom_call.1} parent=0
    #allocation2 [shape = 'u8[8192]{0}', space=vmem, size = 0x2000, scoped, tag = 'input window, operand 0, single buffered']
    #allocation3 [shape = 's32[1]{0}', space=sflag, size = 0x4, scoped, tag = 'scoped memory for tpu_custom_call.1']
    #allocation4 [shape = 's32[1]{0}', space=sflag, size = 0x4, scoped, tag = 'scoped memory for tpu_custom_call.1']
    #allocation5 [shape = 's32[1]{0}', space=sflag, size = 0x4, scoped, tag = 'scoped memory for tpu_custom_call.1']
    #allocation6 [shape = 'u8[512]{0}', space=smem, size = 0x200, scoped, tag = 'output window, operand 0, single buffered']
    #allocation7 [shape = 'u8[512]{0}', space=vmem, size = 0x400, scoped, tag = 'output window, operand 1, single buffered']
    #allocation8 [shape = 'u8[512]{0}', space=vmem, size = 0x400, scoped, tag = 'output window, operand 2, single buffered']
    #allocation9 [shape = 's32[1]{0}', space=sflag, size = 0x4, scoped, tag = 'scoped memory for tpu_custom_call.1']
    %11 = vsyncpa [#allocation3], 0
    %12 = vsyncpa [#allocation5], 0
    %13 = vsyncpa [#allocation4], 0
    %14 = vsyncpa [#allocation9], 0
    // Predicated region
    $region2: #{tpu_custom_call.1} parent=1 // pred_check
      _
    $region3: #{tpu_custom_call.1} parent=1 // pred_check_branch
      %16 = sbr.rel (0) target = $region5
    $region4: #{tpu_custom_call.1} parent=1 // pred_region
      %s18 = ssub.s32 256, 256
      %19 = vsyncadd [#allocation3], %s18
      %s20 = sshll.u32 [#allocation2], 4
      %s21 = int_to_ptr.vmem [resolvable:$true] %s20
      %26 = dma.hbm_to_vmem [thread:$0]  %s0, 256, %s21, [#allocation3], 128, 128, 8
    $region5: #{tpu_custom_call.1} parent=1 // pred_fallthru
      _
    // Predicated region
    $region6: #{tpu_custom_call.1} parent=1 // pred_check
      _
    $region7: #{tpu_custom_call.1} parent=1 // pred_check_branch
      %28 = sbr.rel (0) target = $region9
    $region8: #{tpu_custom_call.1} parent=1 // pred_region
      _
    $region9: #{tpu_custom_call.1} parent=1 // pred_fallthru
      _
    // Predicated region
    $region10: #{tpu_custom_call.1} parent=1 // pred_check
      _
    $region11: #{tpu_custom_call.1} parent=1 // pred_check_branch
      %30 = sbr.rel (0) target = $region13
    $region12: #{tpu_custom_call.1} parent=1 // pred_region
      _
    $region13: #{tpu_custom_call.1} parent=1 // pred_fallthru
      _
    // Predicated region
    $region14: #{tpu_custom_call.1} parent=1 // pred_check
      _
    $region15: #{tpu_custom_call.1} parent=1 // pred_check_branch
      %32 = sbr.rel (0) target = $region17
    $region16: #{tpu_custom_call.1} parent=1 // pred_region
      %33 = dma.done [#allocation3], 256
    $region17: #{tpu_custom_call.1} parent=1 // pred_fallthru
      _
    %v34 = vld [vmem:[#allocation2] sm:$0xff]
    %v35 = vld [vmem:[#allocation2 + $0x8] sm:$0xff]
    %v36 = vld [vmem:[%s1] sm:$0x1]
    %vm37 = vcmask 130048
    %v39 = vsel %vm37, %v36, 0
    %41 = vmatprep.subr.mxu0 0.0
    %42 = vmatpush1.msra.mxu0 %v34
    %43 = vmatprep.subr.mxu0 0.0
    %44 = vmatpush1.msra.mxu0 %v35
    %45 = vmatprep.subr.mxu0 0.0
    %46 = vmatpush1.msra.mxu0 0.0
    %47 = vmatprep.subr.mxu0 0.0
    %48 = vmatpush1.msra.mxu0 0.0
    %49 = vmatprep.subr.mxu0 0.0
    %50 = vmatpush1.msra.mxu0 0.0
    %51 = vmatprep.subr.mxu0 0.0
    %52 = vmatpush1.msra.mxu0 0.0
    %53 = vmatprep.subr.mxu0 0.0
    %54 = vmatpush1.msra.mxu0 0.0
    %55 = vmatprep.subr.mxu0 0.0
    %56 = vmatpush1.msra.mxu0 0.0
    %57 = vmatprep.subr.mxu0 0.0
    %58 = vmatpush1.msra.mxu0 0.0
    %59 = vmatprep.subr.mxu0 0.0
    %60 = vmatpush1.msra.mxu0 0.0
    %61 = vmatprep.subr.mxu0 0.0
    %62 = vmatpush1.msra.mxu0 0.0
    %63 = vmatprep.subr.mxu0 0.0
    %64 = vmatpush1.msra.mxu0 0.0
    %65 = vmatprep.subr.mxu0 0.0
    %66 = vmatpush1.msra.mxu0 0.0
    %67 = vmatprep.subr.mxu0 0.0
    %68 = vmatpush1.msra.mxu0 0.0
    %69 = vmatprep.subr.mxu0 0.0
    %70 = vmatpush1.msra.mxu0 0.0
    %71 = vmatprep.subr.mxu0 0.0
    %72 = vmatpush1.msra.mxu0 0.0
    %73 = vmatprep.subr.mxu0 0.0
    %74 = vmatpush1.msra.mxu0 0.0
    %75 = vmatprep.subr.mxu0 0.0
    %76 = vmatpush1.msra.mxu0 0.0
    %77 = vmatprep.subr.mxu0 0.0
    %78 = vmatpush1.msra.mxu0 0.0
    %79 = vmatprep.subr.mxu0 0.0
    %80 = vmatpush1.msra.mxu0 0.0
    %81 = vmatprep.subr.mxu0 0.0
    %82 = vmatpush1.msra.mxu0 0.0
    %83 = vmatprep.subr.mxu0 0.0
    %84 = vmatpush1.msra.mxu0 0.0
    %85 = vmatprep.subr.mxu0 0.0
    %86 = vmatpush1.msra.mxu0 0.0
    %87 = vmatprep.subr.mxu0 0.0
    %88 = vmatpush1.msra.mxu0 0.0
    %89 = vmatprep.subr.mxu0 0.0
    %90 = vmatpush1.msra.mxu0 0.0
    %91 = vmatprep.subr.mxu0 0.0
    %92 = vmatpush1.msra.mxu0 0.0
    %93 = vmatprep.subr.mxu0 0.0
    %94 = vmatpush1.msra.mxu0 0.0
    %95 = vmatprep.subr.mxu0 0.0
    %96 = vmatpush1.msra.mxu0 0.0
    %97 = vmatprep.subr.mxu0 0.0
    %98 = vmatpush1.msra.mxu0 0.0
    %99 = vmatprep.subr.mxu0 0.0
    %100 = vmatpush1.msra.mxu0 0.0
    %101 = vmatprep.subr.mxu0 0.0
    %102 = vmatpush1.msra.mxu0 0.0
    %103 = vmatprep.subr.mxu0 0.0
    %104 = vmatpush1.msra.mxu0 0.0
    %105 = vmatprep.mubr.f32.mxu0 0.0
    %106 = vmatmul.mubr.f32.gmra.mrb[0].mxu0 %v39
    %v107 = vpop.f32.mrb[0].mxu0
    %v108 = vadd.f32 0.0, %v107
    %v109 = vpop.f32.mrb[0].mxu0
    %110 = vdwg.mxu0
    %v111 = vmul.f32 %v108, %v108
    %vm112 = vcmask 253952
    %v113 = vsel %vm112, %v111, 0.0
    %114 = vadd.xlane.f32.xlu0 %v113
    %v115 = vpop.xlane.xlu0 %114
    %v116 = vrot.slane %v115, 4
    %v117 = vadd.f32 %v115, %v116
    %v118 = vrot.slane %v117, 2
    %v119 = vadd.f32 %v117, %v118
    %v120 = vrot.slane %v119, 1
    %v121 = vadd.f32 %v119, %v120
    %s122 = vtos %v121
    %v123 = vstv %s122
    %v124 = vrsqrt.pop %v123
    %v125 = vmul.f32 %v123, %v124
    %vm126 = vcmp.eq.f32.partialorder %v123, inf
    %v127 = vsel %vm126, %v123, %v125
    %vm128 = vcmp.eq.f32.partialorder %v123, 0.0
    %v129 = vand.u32 %v123, 2147483648
    %v130 = vsel %vm128, %v129, %v127
    %s131 = vtos %v130
    %s132 = sadd.f32 %s131, 1e-12
    %v133 = vstv %s132
    %v134 = vrcp.pop %v133
    %v135 = vmul.f32 %v108, %v134
    %vm136 = vcmask 261120
    %v138 = vsel %vm136, %v135, 0
    %v141 = vsel %vm136, %v34, 0
    %v144 = vsel %vm136, %v35, 0
    %146 = vmatprep.subr.mxu0 0.0
    %147 = vmatpush1.xpose.msra.mxu0 %v141
    %148 = vmatprep.subr.mxu0 0.0
    %149 = vmatpush1.xpose.msra.mxu0 %v144
    %150 = vmatprep.subr.mxu0 0.0
    %151 = vmatpush1.xpose.msra.mxu0 0.0
    %152 = vmatprep.subr.mxu0 0.0
    %153 = vmatpush1.xpose.msra.mxu0 0.0
    %154 = vmatprep.subr.mxu0 0.0
    %155 = vmatpush1.xpose.msra.mxu0 0.0
    %156 = vmatprep.subr.mxu0 0.0
    %157 = vmatpush1.xpose.msra.mxu0 0.0
    %158 = vmatprep.subr.mxu0 0.0
    %159 = vmatpush1.xpose.msra.mxu0 0.0
    %160 = vmatprep.subr.mxu0 0.0
    %161 = vmatpush1.xpose.msra.mxu0 0.0
    %162 = vmatprep.subr.mxu0 0.0
    %163 = vmatpush1.xpose.msra.mxu0 0.0
    %164 = vmatprep.subr.mxu0 0.0
    %165 = vmatpush1.xpose.msra.mxu0 0.0
    %166 = vmatprep.subr.mxu0 0.0
    %167 = vmatpush1.xpose.msra.mxu0 0.0
    %168 = vmatprep.subr.mxu0 0.0
    %169 = vmatpush1.xpose.msra.mxu0 0.0
    %170 = vmatprep.subr.mxu0 0.0
    %171 = vmatpush1.xpose.msra.mxu0 0.0
    %172 = vmatprep.subr.mxu0 0.0
    %173 = vmatpush1.xpose.msra.mxu0 0.0
    %174 = vmatprep.subr.mxu0 0.0
    %175 = vmatpush1.xpose.msra.mxu0 0.0
    %176 = vmatprep.subr.mxu0 0.0
    %177 = vmatpush1.xpose.msra.mxu0 0.0
    %178 = vmatprep.subr.mxu0 0.0
    %179 = vmatpush1.xpose.msra.mxu0 0.0
    %180 = vmatprep.subr.mxu0 0.0
    %181 = vmatpush1.xpose.msra.mxu0 0.0
    %182 = vmatprep.subr.mxu0 0.0
    %183 = vmatpush1.xpose.msra.mxu0 0.0
    %184 = vmatprep.subr.mxu0 0.0
    %185 = vmatpush1.xpose.msra.mxu0 0.0
    %186 = vmatprep.subr.mxu0 0.0
    %187 = vmatpush1.xpose.msra.mxu0 0.0
    %188 = vmatprep.subr.mxu0 0.0
    %189 = vmatpush1.xpose.msra.mxu0 0.0
    %190 = vmatprep.subr.mxu0 0.0
    %191 = vmatpush1.xpose.msra.mxu0 0.0
    %192 = vmatprep.subr.mxu0 0.0
    %193 = vmatpush1.xpose.msra.mxu0 0.0
    %194 = vmatprep.subr.mxu0 0.0
    %195 = vmatpush1.xpose.msra.mxu0 0.0
    %196 = vmatprep.subr.mxu0 0.0
    %197 = vmatpush1.xpose.msra.mxu0 0.0
    %198 = vmatprep.subr.mxu0 0.0
    %199 = vmatpush1.xpose.msra.mxu0 0.0
    %200 = vmatprep.subr.mxu0 0.0
    %201 = vmatpush1.xpose.msra.mxu0 0.0
    %202 = vmatprep.subr.mxu0 0.0
    %203 = vmatpush1.xpose.msra.mxu0 0.0
    %204 = vmatprep.subr.mxu0 0.0
    %205 = vmatpush1.xpose.msra.mxu0 0.0
    %206 = vmatprep.subr.mxu0 0.0
    %207 = vmatpush1.xpose.msra.mxu0 0.0
    %208 = vmatprep.subr.mxu0 0.0
    %209 = vmatpush1.xpose.msra.mxu0 0.0
    %210 = vmatprep.mubr.f32.mxu0 0.0
    %211 = vmatmul.mubr.f32.gmra.mrb[0].mxu0 %v138
    %v212 = vpop.f32.mrb[0].mxu0
    %v213 = vadd.f32 0.0, %v212
    %v214 = vpop.f32.mrb[0].mxu0
    %215 = vdwg.mxu0
    %v216 = vmul.f32 %v213, %v213
    %vm217 = vcmask 122880
    %v218 = vsel %vm217, %v216, 0.0
    %219 = vadd.xlane.f32.xlu0 %v218
    %v220 = vpop.xlane.xlu0 %219
    %v221 = vrot.slane %v220, 4
    %v222 = vadd.f32 %v220, %v221
    %v223 = vrot.slane %v222, 2
    %v224 = vadd.f32 %v222, %v223
    %v225 = vrot.slane %v224, 1
    %v226 = vadd.f32 %v224, %v225
    %s227 = vtos %v226
    %v228 = vstv %s227
    %v229 = vrsqrt.pop %v228
    %v230 = vmul.f32 %v228, %v229
    %vm231 = vcmp.eq.f32.partialorder %v228, inf
    %v232 = vsel %vm231, %v228, %v230
    %vm233 = vcmp.eq.f32.partialorder %v228, 0.0
    %v234 = vand.u32 %v228, 2147483648
    %v235 = vsel %vm233, %v234, %v232
    %s236 = vtos %v235
    %s237 = sadd.f32 %s236, 1e-12
    %v238 = vstv %s237
    %v239 = vrcp.pop %v238
    %v240 = vmul.f32 %v213, %v239
    %v241 = vmul.f32 %v240, %v213
    %v242 = vsel %vm217, %v241, 0.0
    %243 = vadd.xlane.f32.xlu0 %v242
    %v244 = vpop.xlane.xlu0 %243
    %v245 = vrot.slane %v244, 4
    %v246 = vadd.f32 %v244, %v245
    %v247 = vrot.slane %v246, 2
    %v248 = vadd.f32 %v246, %v247
    %v249 = vrot.slane %v248, 1
    %v250 = vadd.f32 %v248, %v249
    %s251 = vtos %v250
    %s252 = smul.f32 %s251, 0.5
    %s253 = smul.f32 %s252, %s251
    %s254 = scalar_lea.smem [#allocation6], 0
    %255 = sst [smem:[%s254]] %s253
    %256 = vst.msk [vmem:[#allocation7] sm:$0x1] %vm217, %v240
    %257 = vst.msk [vmem:[#allocation8] sm:$0x1] %vm112, %v135
    // Predicated region
    $region18: #{tpu_custom_call.1} parent=1 // pred_check
      _
    $region19: #{tpu_custom_call.1} parent=1 // pred_check_branch
      %259 = sbr.rel (0) target = $region21
    $region20: #{tpu_custom_call.1} parent=1 // pred_region
      %s261 = ssub.s32 16, 16
      %262 = vsyncadd [#allocation5], %s261
      %265 = dma.smem_to_hbm [#allocation6], 16, %s3, [#allocation5]
    $region21: #{tpu_custom_call.1} parent=1 // pred_fallthru
      _
    // Predicated region
    $region22: #{tpu_custom_call.1} parent=1 // pred_check
      _
    $region23: #{tpu_custom_call.1} parent=1 // pred_check_branch
      %267 = sbr.rel (0) target = $region25
    $region24: #{tpu_custom_call.1} parent=1 // pred_region
      %s269 = ssub.s32 16, 16
      %270 = vsyncadd [#allocation4], %s269
      %s272 = sshll.u32 [#allocation7], 4
      %s273 = int_to_ptr.vmem [resolvable:$true] %s272
      %275 = dma.vmem_to_hbm [thread:$0]  %s273, 16, %s4, [#allocation4]
    $region25: #{tpu_custom_call.1} parent=1 // pred_fallthru
      _
    // Predicated region
    $region26: #{tpu_custom_call.1} parent=1 // pred_check
      _
    $region27: #{tpu_custom_call.1} parent=1 // pred_check_branch
      %277 = sbr.rel (0) target = $region29
    $region28: #{tpu_custom_call.1} parent=1 // pred_region
      %s279 = ssub.s32 16, 16
      %280 = vsyncadd [#allocation9], %s279
      %s282 = sshll.u32 [#allocation8], 4
      %s283 = int_to_ptr.vmem [resolvable:$true] %s282
      %285 = dma.vmem_to_hbm [thread:$0]  %s283, 16, %s5, [#allocation9]
    $region29: #{tpu_custom_call.1} parent=1 // pred_fallthru
      _
    // Predicated region
    $region30: #{tpu_custom_call.1} parent=1 // pred_check
      _
    $region31: #{tpu_custom_call.1} parent=1 // pred_check_branch
      %287 = sbr.rel (0) target = $region33
    $region32: #{tpu_custom_call.1} parent=1 // pred_region
      %288 = dma.done [#allocation5], 16
    $region33: #{tpu_custom_call.1} parent=1 // pred_fallthru
      _
    // Predicated region
    $region34: #{tpu_custom_call.1} parent=1 // pred_check
      _
    $region35: #{tpu_custom_call.1} parent=1 // pred_check_branch
      %290 = sbr.rel (0) target = $region37
    $region36: #{tpu_custom_call.1} parent=1 // pred_region
      %291 = dma.done [#allocation4], 16
    $region37: #{tpu_custom_call.1} parent=1 // pred_fallthru
      _
    // Predicated region
    $region38: #{tpu_custom_call.1} parent=1 // pred_check
      _
    $region39: #{tpu_custom_call.1} parent=1 // pred_check_branch
      %293 = sbr.rel (0) target = $region41
    $region40: #{tpu_custom_call.1} parent=1 // pred_region
      %294 = dma.done [#allocation9], 16
    $region41: #{tpu_custom_call.1} parent=1 // pred_fallthru
      _
    %295 = sfence
    %296 = vsyncpa [#allocation3], 1
    %297 = vsyncpa [#allocation4], 1
    %298 = vsyncpa [#allocation9], 1
    %299 = vsyncpa [#allocation5], 1

</llo_original>
